<compile_context>
chip_gen: v5e
topology: v5e:2x2
jax: 0.10.0
libtpu: 0.0.40
codegen_flags: <defaults>
</compile_context>

<pallas_src>
import functools
import math

import jax
import jax.numpy as jnp
from jax.experimental import pallas as pl
from jax.experimental.pallas import tpu as pltpu


_MAX_TILE_LANES = 65536            # per review: 32768-65536 lane cap
# Budget (bytes) for the two double-buffered input tiles.
_VMEM_INPUT_BUDGET = 16 * 1024 * 1024


def _round_up(x, m):
    return ((x + m - 1) // m) * m


def _num_tensorcores():
    """TensorCores per device: 2 on megacore v4/v5p and on v7x, else 1."""
    try:
        kind = jax.devices()[0].device_kind.lower()
    except Exception:
        return 1
    if "v7" in kind or "v5p" in kind or ("v4" in kind and "lite" not in kind):
        return 2
    return 1


def _bce_dice_partial_kernel(p_ref, t_ref, out_ref):
    """Accumulate per-row, lane-wise partial sums over feature tiles.

    Grid axis 0 ("parallel") indexes independent feature chunks; grid axis 1
    ("arbitrary") is that chunk's reduction over feature tiles.  The
    (rows, 384) output block is a grid-resident accumulator holding three
    lane-wise partials: [:, 0:128] = +BCE terms, [:, 128:256] = sum(p*t),
    [:, 256:384] = sum(p + t).  The 128->1 lane reduction and the BCE
    negation happen in the tiny JAX epilogue.
    """
    j = pl.program_id(1)

    @pl.when(j == 0)
    def _():
        out_ref[...] = jnp.zeros_like(out_ref)

    rows = p_ref.shape[0]
    n_groups = p_ref.shape[1] // 128   # 128-lane vreg columns per tile

    def body(g, carry):
        s_bce, s_int, s_den = carry
        off = pl.multiple_of(g * 128, 128)
        p = p_ref[:, pl.ds(off, 128)].astype(jnp.float32)
        t = t_ref[:, pl.ds(off, 128)].astype(jnp.float32)
        # nn.BCELoss clamps each log term at -100 (PyTorch semantics).
        log_p = jnp.maximum(jnp.log(p), -100.0)
        log_1mp = jnp.maximum(jnp.log(1.0 - p), -100.0)
        # +(t*log_p + (1-t)*log_1mp); negated once in the wrapper.
        s_bce = s_bce + (log_1mp + t * (log_p - log_1mp))
        s_int = s_int + p * t
        s_den = s_den + (p + t)
        return s_bce, s_int, s_den

    zeros = jnp.zeros((rows, 128), jnp.float32)
    s_bce, s_int, s_den = jax.lax.fori_loop(
        0, n_groups, body, (zeros, zeros, zeros),
        unroll=min(8, n_groups))

    out_ref[:, 0:128] += s_bce
    out_ref[:, 128:256] += s_int
    out_ref[:, 256:384] += s_den


@functools.partial(jax.jit, static_argnames=("wb", "wd", "max_tile_lanes"))
def bce_dice_loss(pred, target, wb=1.0, wd=1.0, max_tile_lanes=_MAX_TILE_LANES):
    """pred, target: (B, C, H, W) arrays, pred in (0, 1). Returns scalar loss."""
    B = pred.shape[0]
    D = math.prod(pred.shape[1:])

    # Rows per sample: fill the packed-dtype sublane tile (8 for 4-byte,
    # 16 for 2-byte, 32 for 1-byte elements) so every vreg is fully used.
    min_itemsize = min(jnp.dtype(pred.dtype).itemsize,
                       jnp.dtype(target.dtype).itemsize, 4)
    sub = 32 // min_itemsize
    R = sub // math.gcd(B, sub)
    B_rows = B * R
    D_row_raw = -(-D // R)                       # ceil(D / R)

    # Lane-tile cap from the VMEM budget (2 inputs x 2 pipeline buffers).
    bytes_per_col = B_rows * (jnp.dtype(pred.dtype).itemsize +
                              jnp.dtype(target.dtype).itemsize)
    tk_cap = _VMEM_INPUT_BUDGET // (2 * bytes_per_col)
    tk_cap = max(128, min(max_tile_lanes, (tk_cap // 128) * 128))

    # Fix the tile count first, then re-derive tk so per-row zero padding is
    # < 128 * T_total (instead of up to NC * tk on unlucky shapes).
    n_tiles_raw = -(-D_row_raw // tk_cap)
    NC = 2 if (_num_tensorcores() >= 2 and n_tiles_raw >= 2) else 1
    T_total = NC * (-(-n_tiles_raw // NC))
    tk = _round_up(-(-D_row_raw // T_total), 128)
    D_row_pad = T_total * tk
    T = T_total // NC                            # reduction tiles per chunk

    pred2 = pred.reshape(B, D)
    target2 = target.reshape(B, D)
    # NOTE: if `target` is known to be a {0,1} mask, casting it to bfloat16
    # here is exact and cuts HBM bytes ~25%; kept in native dtype so the
    # kernel matches nn.BCELoss for arbitrary (soft) targets.
    pad = R * D_row_pad - D
    if pad:
        # pred=0 / target=0 padding contributes exactly 0 to all three sums
        # (the -100 log clamp keeps the BCE term finite and zero-weighted).
        pred2 = jnp.pad(pred2, ((0, 0), (0, pad)))
        target2 = jnp.pad(target2, ((0, 0), (0, pad)))
    pred2 = pred2.reshape(B_rows, D_row_pad)
    target2 = target2.reshape(B_rows, D_row_pad)

    partial = pl.pallas_call(
        _bce_dice_partial_kernel,
        out_shape=jax.ShapeDtypeStruct((NC, B_rows, 384), jnp.float32),
        grid_spec=pltpu.PrefetchScalarGridSpec(
            num_scalar_prefetch=0,
            grid=(NC, T),
            in_specs=[
                pl.BlockSpec((B_rows, tk), lambda c, j: (0, c * T + j)),
                pl.BlockSpec((B_rows, tk), lambda c, j: (0, c * T + j)),
            ],
            out_specs=pl.BlockSpec((None, B_rows, 384), lambda c, j: (c, 0, 0)),
        ),
        compiler_params=pltpu.CompilerParams(
            # NOTE: on v7x, if a profile shows one TensorCore idle on the NC
            # axis, switch that axis to pltpu.CORE_PARALLEL.
            dimension_semantics=("parallel", "arbitrary"),
            vmem_limit_bytes=32 * 1024 * 1024,
        ),
    )(pred2, target2)

    # Tiny epilogue in plain JAX: fold chunks, lanes, and rows-per-sample.
    partial = jnp.sum(partial, axis=0)                          # (B_rows, 384)
    lanes3 = jnp.sum(partial.reshape(B_rows, 3, 128), axis=-1)  # (B_rows, 3)
    per_sample = jnp.sum(lanes3.reshape(B, R, 3), axis=1)       # (B, 3)

    bce_sum = per_sample[:, 0]       # +sum of (t*log p + (1-t)*log(1-p))
    inter = per_sample[:, 1]
    denom = per_sample[:, 2]

    # BCE: mean over all B*D elements (original, unpadded count), negated here.
    bce_loss = -jnp.sum(bce_sum) / (B * D)

    # Dice: per-sample score, then 1 - mean over batch (smooth = 1).
    smooth = 1.0
    dice_score = (2.0 * inter + smooth) / (denom + smooth)
    dice_loss = 1.0 - jnp.sum(dice_score) / B

    return wd * dice_loss + wb * bce_loss


def _reference(pred, target, wb=1.0, wd=1.0):
    """Pure-JAX reference mirroring the PyTorch module."""
    B = pred.shape[0]
    p = pred.reshape(B, -1).astype(jnp.float32)
    t = target.reshape(B, -1).astype(jnp.float32)
    log_p = jnp.maximum(jnp.log(p), -100.0)
    log_1mp = jnp.maximum(jnp.log(1.0 - p), -100.0)
    bce = jnp.mean(-(t * log_p + (1.0 - t) * log_1mp))
    inter = jnp.sum(p * t, axis=1)
    dice_score = (2.0 * inter + 1.0) / (jnp.sum(p, axis=1) + jnp.sum(t, axis=1) + 1.0)
    dice = 1.0 - jnp.sum(dice_score) / B
    return wd * dice + wb * bce


if __name__ == "__main__":
    key = jax.random.PRNGKey(0)
    k1, k2, k3, k4 = jax.random.split(key, 4)

    # Primary test: B=2, C=4, H=W=16 (lane-aligned D = 1024).
    B, C, H, W = 2, 4, 16, 16
    pred = jax.nn.sigmoid(jax.random.normal(k1, (B, C, H, W), dtype=jnp.float32))
    target = (jax.random.uniform(k2, (B, C, H, W)) > 0.5).astype(jnp.float32)
    loss = jax.block_until_ready(bce_dice_loss(pred, target, wb=1.0, wd=1.0))
    ref = _reference(pred, target)
    assert jnp.allclose(loss, ref, rtol=1e-5, atol=1e-5), (loss, ref)

    # Awkward D = 300 (exercises the zero-contribution padding).
    B2, C2, H2, W2 = 2, 3, 10, 10
    pred_b = jax.nn.sigmoid(jax.random.normal(k3, (B2, C2, H2, W2), dtype=jnp.float32))
    target_b = (jax.random.uniform(k4, (B2, C2, H2, W2)) > 0.5).astype(jnp.float32)
    loss_b = jax.block_until_ready(bce_dice_loss(pred_b, target_b))
    ref_b = _reference(pred_b, target_b)
    assert jnp.allclose(loss_b, ref_b, rtol=1e-5, atol=1e-5), (loss_b, ref_b)

    # Multi-tile path: shrink the lane cap so the primary shape needs more
    # than one grid step (exercises the grid-resident accumulator / pl.when).
    loss_c = jax.block_until_ready(bce_dice_loss(pred, target, max_tile_lanes=128))
    assert jnp.allclose(loss_c, ref, rtol=1e-5, atol=1e-5), (loss_c, ref)

    print("KERNEL_OK")
</pallas_src>

<mosaic_0001>
module attributes {stable_mosaic.version = 11 : i64} {
  func.func @_bce_dice_partial_kernel(%arg0: i32, %arg1: i32, %arg2: memref<8x256xf32, #tpu.memory_space<vmem>>, %arg3: memref<8x256xf32, #tpu.memory_space<vmem>>, %arg4: memref<1x8x384xf32, #tpu.memory_space<vmem>>) attributes {dimension_semantics = [#tpu.dimension_semantics<parallel>, #tpu.dimension_semantics<arbitrary>], iteration_bounds = array<i64: 1, 1>, scalar_prefetch = 0 : i64, scratch_operands = 0 : i64, tpu.core_type = #tpu.core_type<tc>, window_params = [{transform_indices = @transform_0, window_bounds = array<i64: 8, 256>}, {transform_indices = @transform_1, window_bounds = array<i64: 8, 256>}, {transform_indices = @transform_2, window_bounds = array<i64: 1, 8, 384>}]} {
    %c0_i32 = arith.constant 0 : i32
    %0 = arith.cmpi eq, %arg1, %c0_i32 : i32
    %1 = arith.extui %0 : i1 to i32
    %c0_i32_0 = arith.constant 0 : i32
    %2 = arith.cmpi ne, %1, %c0_i32_0 : i32
    scf.if %2 {
      %cst_28 = arith.constant 0.000000e+00 : f32
      %66 = vector.broadcast %cst_28 : f32 to vector<8x384xf32>
      %c0_29 = arith.constant 0 : index
      %c0_30 = arith.constant 0 : index
      %c0_31 = arith.constant 0 : index
      %67 = vector.load %arg4[%c0_29, %c0_30, %c0_31] : memref<1x8x384xf32, #tpu.memory_space<vmem>>, vector<1x8x384xf32>
      %68 = vector.shape_cast %67 : vector<1x8x384xf32> to vector<8x384xf32>
      %69 = vector.shape_cast %66 : vector<8x384xf32> to vector<1x8x384xf32>
      tpu.vector_store %arg4[%c0_29, %c0_30, %c0_31], %69 {strides = array<i32>} : memref<1x8x384xf32, #tpu.memory_space<vmem>>, vector<1x8x384xf32>,
    } else {
    }
    %cst = arith.constant 0.000000e+00 : f32
    %3 = vector.broadcast %cst : f32 to vector<8x128xf32>
    %c0_i32_1 = arith.constant 0 : i32
    %c128_i32 = arith.constant 128 : i32
    %4 = arith.muli %c0_i32_1, %c128_i32 : i32
    %5 = tpu.assume_multiple %4, 128 : i32
    %c0 = arith.constant 0 : index
    %6 = arith.index_cast %5 : i32 to index
    %7 = vector.load %arg2[%c0, %6] : memref<8x256xf32, #tpu.memory_space<vmem>>, vector<8x128xf32>
    %c0_2 = arith.constant 0 : index
    %8 = arith.index_cast %5 : i32 to index
    %9 = vector.load %arg3[%c0_2, %8] : memref<8x256xf32, #tpu.memory_space<vmem>>, vector<8x128xf32>
    %10 = math.log %7 : vector<8x128xf32>
    %cst_3 = arith.constant -1.000000e+02 : f32
    %11 = vector.broadcast %cst_3 : f32 to vector<8x128xf32>
    %12 = arith.maximumf %10, %11 : vector<8x128xf32>
    %cst_4 = arith.constant 1.000000e+00 : f32
    %13 = vector.broadcast %cst_4 : f32 to vector<8x128xf32>
    %14 = arith.subf %13, %7 : vector<8x128xf32>
    %15 = math.log %14 : vector<8x128xf32>
    %cst_5 = arith.constant -1.000000e+02 : f32
    %16 = vector.broadcast %cst_5 : f32 to vector<8x128xf32>
    %17 = arith.maximumf %15, %16 : vector<8x128xf32>
    %18 = arith.subf %12, %17 : vector<8x128xf32>
    %19 = arith.mulf %9, %18 : vector<8x128xf32>
    %20 = arith.addf %17, %19 : vector<8x128xf32>
    %21 = arith.addf %3, %20 : vector<8x128xf32>
    %22 = arith.mulf %7, %9 : vector<8x128xf32>
    %23 = arith.addf %3, %22 : vector<8x128xf32>
    %24 = arith.addf %7, %9 : vector<8x128xf32>
    %25 = arith.addf %3, %24 : vector<8x128xf32>
    %c1_i32 = arith.constant 1 : i32
    %c128_i32_6 = arith.constant 128 : i32
    %26 = arith.muli %c1_i32, %c128_i32_6 : i32
    %27 = tpu.assume_multiple %26, 128 : i32
    %c0_7 = arith.constant 0 : index
    %28 = arith.index_cast %27 : i32 to index
    %29 = vector.load %arg2[%c0_7, %28] : memref<8x256xf32, #tpu.memory_space<vmem>>, vector<8x128xf32>
    %c0_8 = arith.constant 0 : index
    %30 = arith.index_cast %27 : i32 to index
    %31 = vector.load %arg3[%c0_8, %30] : memref<8x256xf32, #tpu.memory_space<vmem>>, vector<8x128xf32>
    %32 = math.log %29 : vector<8x128xf32>
    %cst_9 = arith.constant -1.000000e+02 : f32
    %33 = vector.broadcast %cst_9 : f32 to vector<8x128xf32>
    %34 = arith.maximumf %32, %33 : vector<8x128xf32>
    %cst_10 = arith.constant 1.000000e+00 : f32
    %35 = vector.broadcast %cst_10 : f32 to vector<8x128xf32>
    %36 = arith.subf %35, %29 : vector<8x128xf32>
    %37 = math.log %36 : vector<8x128xf32>
    %cst_11 = arith.constant -1.000000e+02 : f32
    %38 = vector.broadcast %cst_11 : f32 to vector<8x128xf32>
    %39 = arith.maximumf %37, %38 : vector<8x128xf32>
    %40 = arith.subf %34, %39 : vector<8x128xf32>
    %41 = arith.mulf %31, %40 : vector<8x128xf32>
    %42 = arith.addf %39, %41 : vector<8x128xf32>
    %43 = arith.addf %21, %42 : vector<8x128xf32>
    %44 = arith.mulf %29, %31 : vector<8x128xf32>
    %45 = arith.addf %23, %44 : vector<8x128xf32>
    %46 = arith.addf %29, %31 : vector<8x128xf32>
    %47 = arith.addf %25, %46 : vector<8x128xf32>
    %c2_i32 = arith.constant 2 : i32
    %c0_12 = arith.constant 0 : index
    %c0_13 = arith.constant 0 : index
    %c0_14 = arith.constant 0 : index
    %48 = vector.load %arg4[%c0_12, %c0_13, %c0_14] : memref<1x8x384xf32, #tpu.memory_space<vmem>>, vector<1x8x128xf32>
    %49 = vector.shape_cast %48 : vector<1x8x128xf32> to vector<8x128xf32>
    %50 = arith.addf %49, %43 : vector<8x128xf32>
    %c0_15 = arith.constant 0 : index
    %c0_16 = arith.constant 0 : index
    %c0_17 = arith.constant 0 : index
    %51 = vector.load %arg4[%c0_15, %c0_16, %c0_17] : memref<1x8x384xf32, #tpu.memory_space<vmem>>, vector<1x8x128xf32>
    %52 = vector.shape_cast %51 : vector<1x8x128xf32> to vector<8x128xf32>
    %53 = vector.shape_cast %50 : vector<8x128xf32> to vector<1x8x128xf32>
    tpu.vector_store %arg4[%c0_15, %c0_16, %c0_17], %53 {strides = array<i32>} : memref<1x8x384xf32, #tpu.memory_space<vmem>>, vector<1x8x128xf32>,
    %c0_18 = arith.constant 0 : index
    %c0_19 = arith.constant 0 : index
    %c128 = arith.constant 128 : index
    %54 = vector.load %arg4[%c0_18, %c0_19, %c128] : memref<1x8x384xf32, #tpu.memory_space<vmem>>, vector<1x8x128xf32>
    %55 = vector.shape_cast %54 : vector<1x8x128xf32> to vector<8x128xf32>
    %56 = arith.addf %55, %45 : vector<8x128xf32>
    %c0_20 = arith.constant 0 : index
    %c0_21 = arith.constant 0 : index
    %c128_22 = arith.constant 128 : index
    %57 = vector.load %arg4[%c0_20, %c0_21, %c128_22] : memref<1x8x384xf32, #tpu.memory_space<vmem>>, vector<1x8x128xf32>
    %58 = vector.shape_cast %57 : vector<1x8x128xf32> to vector<8x128xf32>
    %59 = vector.shape_cast %56 : vector<8x128xf32> to vector<1x8x128xf32>
    tpu.vector_store %arg4[%c0_20, %c0_21, %c128_22], %59 {strides = array<i32>} : memref<1x8x384xf32, #tpu.memory_space<vmem>>, vector<1x8x128xf32>,
    %c0_23 = arith.constant 0 : index
    %c0_24 = arith.constant 0 : index
    %c256 = arith.constant 256 : index
    %60 = vector.load %arg4[%c0_23, %c0_24, %c256] : memref<1x8x384xf32, #tpu.memory_space<vmem>>, vector<1x8x128xf32>
    %61 = vector.shape_cast %60 : vector<1x8x128xf32> to vector<8x128xf32>
    %62 = arith.addf %61, %47 : vector<8x128xf32>
    %c0_25 = arith.constant 0 : index
    %c0_26 = arith.constant 0 : index
    %c256_27 = arith.constant 256 : index
    %63 = vector.load %arg4[%c0_25, %c0_26, %c256_27] : memref<1x8x384xf32, #tpu.memory_space<vmem>>, vector<1x8x128xf32>
    %64 = vector.shape_cast %63 : vector<1x8x128xf32> to vector<8x128xf32>
    %65 = vector.shape_cast %62 : vector<8x128xf32> to vector<1x8x128xf32>
    tpu.vector_store %arg4[%c0_25, %c0_26, %c256_27], %65 {strides = array<i32>} : memref<1x8x384xf32, #tpu.memory_space<vmem>>, vector<1x8x128xf32>,
    return
  }
  func.func @transform_0(%arg0: i32, %arg1: i32) -> (i32, i32) {
    %c1_i32 = arith.constant 1 : i32
    %0 = arith.muli %arg0, %c1_i32 : i32
    %1 = arith.addi %0, %arg1 : i32
    %c0_i32 = arith.constant 0 : i32
    %c0_i32_0 = arith.constant 0 : i32
    return %c0_i32, %1 : i32, i32
  }
  func.func @transform_1(%arg0: i32, %arg1: i32) -> (i32, i32) {
    %c1_i32 = arith.constant 1 : i32
    %0 = arith.muli %arg0, %c1_i32 : i32
    %1 = arith.addi %0, %arg1 : i32
    %c0_i32 = arith.constant 0 : i32
    %c0_i32_0 = arith.constant 0 : i32
    return %c0_i32, %1 : i32, i32
  }
  func.func @transform_2(%arg0: i32, %arg1: i32) -> (i32, i32, i32) {
    %c0_i32 = arith.constant 0 : i32
    %c0_i32_0 = arith.constant 0 : i32
    %c0_i32_1 = arith.constant 0 : i32
    return %arg0, %c0_i32, %c0_i32_0 : i32, i32, i32
  }
}

</mosaic_0001>

<llo_original>
// kernel: bce_dice_loss.1
$region0: #{bce_dice_loss.1}
  #allocation0 [shape = 'u32[]', space=smem, size = 0x4, offset = 0x4, fixed_abs, tag = 'smem constant byte address 0x4 - core index']
  #allocation1 [shape = 'u32[72,128]{1,0:T(1,128)}', space=vmem, size = 0x9000, scoped, tag = 'internal scratch']
  %s0 = inlined_call_operand.vmem [shape: f32[8,256], index: 0, kind: input, shape index: {}]
  %s1 = inlined_call_operand.vmem [shape: f32[8,256], index: 1, kind: input, shape index: {}]
  %s2 = inlined_call_operand.vmem [shape: f32[1,8,384], index: 2, kind: output, shape index: {}]
  %s3 = sld [smem:[#allocation0]]
  $region22: #{bce_dice_loss.1} parent=0
    _
  %s5 = ssub.s32 1, %s3
  %s6 = scalar_select 0, %s5, %s3
  // Predicated region
  $region2: #{bce_dice_loss.1} parent=0 // pred_check
    _
  $region3: #{bce_dice_loss.1} parent=0 // pred_check_branch
    %8 = sbr.rel (0) target = $region5
  $region4: #{bce_dice_loss.1} parent=0 // pred_region
    %s9 = sadd.s32 0, 0
    %s10 = smul.u32 2, %s9
    %p11 = scmp.lt.s32.totalorder %s10, 1
    %s12 = scalar_select %p11, %s10, 1
    %s13 = smul.addr %s12, 8
    %s14 = scalar_lea.vmem %s0, %s13
    %s15 = sadd.s32 0, 0
    %s16 = smul.u32 2, %s15
  $region5: #{bce_dice_loss.1} parent=0 // pred_fallthru
    _
  // Predicated region
  $region6: #{bce_dice_loss.1} parent=0 // pred_check
    _
  $region7: #{bce_dice_loss.1} parent=0 // pred_check_branch
    %18 = sbr.rel (0) target = $region9
  $region8: #{bce_dice_loss.1} parent=0 // pred_region
    %s19 = sadd.s32 0, 0
    %s20 = smul.u32 2, %s19
    %p21 = scmp.lt.s32.totalorder %s20, 1
    %s22 = scalar_select %p21, %s20, 1
    %s23 = smul.addr %s22, 8
    %s24 = scalar_lea.vmem %s1, %s23
    %s25 = sadd.s32 0, 0
    %s26 = smul.u32 2, %s25
  $region9: #{bce_dice_loss.1} parent=0 // pred_fallthru
    _
  %s27 = sadd.s32 0, 0
  %s28 = smul.u32 2, %s27
  %p29 = scmp.lt.s32.totalorder %s28, 1
  %s30 = scalar_select %p29, %s28, 1
  %s31 = smul.addr %s30, 8
  %s32 = scalar_lea.vmem %s0, %s31
  %s33 = sadd.s32 0, 0
  %s34 = smul.u32 2, %s33
  %p35 = scmp.lt.s32.totalorder %s34, 1
  %s36 = scalar_select %p35, %s34, 1
  %s37 = smul.addr %s36, 8
  %s38 = scalar_lea.vmem %s1, %s37
  %s39 = sadd.s32 0, 0
  %s40 = smul.u32 2, %s39
  %p41 = scmp.lt.s32.totalorder %s40, 1
  %s42 = scalar_select %p41, %s40, 1
  %s43 = smul.addr %s42, 8
  %s44 = scalar_lea.vmem %s0, %s43
  %s45 = sadd.s32 0, 0
  %s46 = smul.u32 2, %s45
  %s47 = sadd.s32 0, 0
  %s48 = smul.u32 2, %s47
  %p49 = scmp.lt.s32.totalorder %s48, 1
  %s50 = scalar_select %p49, %s48, 1
  %s51 = smul.addr %s50, 8
  %s52 = scalar_lea.vmem %s1, %s51
  %s53 = sadd.s32 0, 0
  %s54 = smul.u32 2, %s53
  %p55 = scmp.eq.s32.totalorder 0, 0
  // Predicated region
  $region10: #{bce_dice_loss.1} parent=0 // pred_check
    %p56 = pneg %p55
  $region11: #{bce_dice_loss.1} parent=0 // pred_check_branch
    %58 = sbr.rel (%p56) target = $region13
  $region12: #{bce_dice_loss.1} parent=0 // pred_region
    %59 = vst [vmem:[%s2] sm:$0xff] 0.0
    %60 = vst [vmem:[%s2 + $0x8] sm:$0xff] 0.0
    %61 = vst [vmem:[%s2 + $0x10] sm:$0xff] 0.0
  $region13: #{bce_dice_loss.1} parent=0 // pred_fallthru
    _
  %v62 = vld [vmem:[%s44] sm:$0xff]
  %v63 = vld [vmem:[%s52] sm:$0xff]
  %v64 = vlog2.pop %v62
  %v65 = vmul.f32 %v64, 0.6931472
  %v66 = vmax.f32 %v65, -100.0
  %v67 = vsub.f32 1.0, %v62
  %v68 = vlog2.pop %v67
  %v69 = vmul.f32 %v68, 0.6931472
  %v70 = vmax.f32 %v69, -100.0
  %v71 = vsub.f32 %v66, %v70
  %v72 = vmul.f32 %v63, %v71
  %v73 = vadd.f32 %v70, %v72
  %v74 = vadd.f32 %v73, 0.0
  %v75 = vmul.f32 %v62, %v63
  %v76 = vadd.f32 %v75, 0.0
  %v77 = vadd.f32 %v62, %v63
  %v78 = vadd.f32 %v77, 0.0
  %s79 = scalar_lea.vmem %s44, 8
  %v80 = vld [vmem:[%s79] sm:$0xff]
  %s81 = scalar_lea.vmem %s52, 8
  %v82 = vld [vmem:[%s81] sm:$0xff]
  %v83 = vlog2.pop %v80
  %v84 = vmul.f32 %v83, 0.6931472
  %v85 = vmax.f32 %v84, -100.0
  %v86 = vsub.f32 1.0, %v80
  %v87 = vlog2.pop %v86
  %v88 = vmul.f32 %v87, 0.6931472
  %v89 = vmax.f32 %v88, -100.0
  %v90 = vsub.f32 %v85, %v89
  %v91 = vmul.f32 %v82, %v90
  %v92 = vadd.f32 %v89, %v91
  %v93 = vadd.f32 %v74, %v92
  %v94 = vmul.f32 %v80, %v82
  %v95 = vadd.f32 %v76, %v94
  %v96 = vadd.f32 %v80, %v82
  %v97 = vadd.f32 %v78, %v96
  %v98 = vld [vmem:[%s2] sm:$0xff]
  %v99 = vadd.f32 %v98, %v93
  %100 = vst [vmem:[%s2] sm:$0xff] %v99
  %v101 = vld [vmem:[%s2 + $0x8] sm:$0xff]
  %v102 = vadd.f32 %v101, %v95
  %103 = vst [vmem:[%s2 + $0x8] sm:$0xff] %v102
  %v104 = vld [vmem:[%s2 + $0x10] sm:$0xff]
  %v105 = vadd.f32 %v104, %v97
  %106 = vst [vmem:[%s2 + $0x10] sm:$0xff] %v105
  // Predicated region
  $region14: #{bce_dice_loss.1} parent=0 // pred_check
    _
  $region15: #{bce_dice_loss.1} parent=0 // pred_check_branch
    %108 = sbr.rel (0) target = $region17
  $region16: #{bce_dice_loss.1} parent=0 // pred_region
    _
  $region17: #{bce_dice_loss.1} parent=0 // pred_fallthru
    _
  // Predicated region
  $region18: #{bce_dice_loss.1} parent=0 // pred_check
    _
  $region19: #{bce_dice_loss.1} parent=0 // pred_check_branch
    %110 = sbr.rel (0) target = $region21
  $region20: #{bce_dice_loss.1} parent=0 // pred_region
    _
  $region21: #{bce_dice_loss.1} parent=0 // pred_fallthru
    _

</llo_original>
